<compile_context>
chip_gen: v6e
topology: v6e:2x2x1
jax: 0.10.0
libtpu: 0.0.40
codegen_flags: <defaults>
</compile_context>

<pallas_src>
import math

import jax
import jax.numpy as jnp
from jax import lax
from jax.experimental import pallas as pl
from jax.experimental.pallas import tpu as pltpu

HID = 256  # hidden width of the embedding MLP (from the PyTorch module)


def _elu(h):
    # ELU with alpha = 1.0 (PyTorch default); overflow-safe.
    return jnp.where(h > 0, h, jnp.exp(jnp.minimum(h, 0.0)) - 1.0)


def _round_up(v, m):
    return (v + m - 1) // m * m


def _make_fused_kernel(C, row_tile):
    two_c = 2 * C

    def kernel(y_ref, w1_ref, b1_ref, w2_ref, b2_ref, w3_ref, b3_ref,
               x_ref, o_ref):
        # y_ref : (BC_pad, 1) resident  -- y value repeated per channel row
        # w*/b* : resident MLP weights (fetched once, block index never changes)
        # x_ref : (row_tile, HW) current row tile; o_ref same
        i = pl.program_id(0)
        start = pl.multiple_of(i * row_tile, row_tile)

        # ---- embedding MLP on this tile's rows (tiny, recomputed per tile) ----
        y_t = y_ref[pl.ds(start, row_tile), :]                       # (T, 1)
        h1 = _elu(y_t * w1_ref[...] + b1_ref[...])                   # (T, HID)
        h2 = _elu(jnp.dot(h1, w2_ref[...],
                          preferred_element_type=jnp.float32) + b2_ref[...])
        sbe = (jnp.dot(h2, w3_ref[...], preferred_element_type=jnp.float32)
               + b3_ref[...])                                        # (T, 2C)

        # ---- per-row select: scale = sbe[r, r % C], bias = sbe[r, C + r % C] ----
        rows = start + lax.broadcasted_iota(jnp.int32, (row_tile, 1), 0)  # (T,1)
        rmod = lax.rem(rows, jnp.int32(C))                                # (T,1)
        ch = lax.broadcasted_iota(jnp.int32, (row_tile, two_c), 1)        # (T,2C)
        scale = jnp.sum(jnp.where(ch == rmod, sbe, 0.0),
                        axis=-1, keepdims=True)                           # (T,1)
        bias = jnp.sum(jnp.where(ch == rmod + C, sbe, 0.0),
                       axis=-1, keepdims=True)                            # (T,1)

        # ---- memory-bound affine: out = x * scale + bias ----
        xv = x_ref[...].astype(jnp.float32)
        o_ref[...] = (xv * scale + bias).astype(o_ref.dtype)

    return kernel


def continuous_conditional_actnorm(x, y, params, *, row_tile=None):
    """x: [B, C, H, W], y: [B]. params = (w1, b1, w2, b2, w3, b3)."""
    B, C, H, W = x.shape
    HW = H * W
    BC = B * C
    w1, b1, w2, b2, w3, b3 = params

    # Row tile: multiple of 8 sublanes, ~2 MiB of x per block, capped at 512.
    if row_tile is None:
        budget_rows = max(8, (2 << 20) // (HW * x.dtype.itemsize))
        cap = _round_up(min(budget_rows, 512), 8)
        row_tile = min(_round_up(BC, 8), cap)
    bc_pad = _round_up(BC, row_tile)

    # Collapse x to (B*C, HW); expand y to one scalar per (batch, channel) row.
    xf = x.reshape(BC, HW)
    ye = jnp.repeat(y.astype(jnp.float32), C)[:, None]        # (BC, 1)
    if bc_pad != BC:
        xf = jnp.pad(xf, ((0, bc_pad - BC), (0, 0)))
        ye = jnp.pad(ye, ((0, bc_pad - BC), (0, 0)))

    grid = (bc_pad // row_tile,)

    out = pl.pallas_call(
        _make_fused_kernel(C, row_tile),
        out_shape=jax.ShapeDtypeStruct((bc_pad, HW), x.dtype),
        grid=grid,
        in_specs=[
            pl.BlockSpec((bc_pad, 1), lambda i: (0, 0)),       # y rows (resident)
            pl.BlockSpec((1, HID), lambda i: (0, 0)),          # w1
            pl.BlockSpec((1, HID), lambda i: (0, 0)),          # b1
            pl.BlockSpec((HID, HID), lambda i: (0, 0)),        # w2
            pl.BlockSpec((1, HID), lambda i: (0, 0)),          # b2
            pl.BlockSpec((HID, 2 * C), lambda i: (0, 0)),      # w3
            pl.BlockSpec((1, 2 * C), lambda i: (0, 0)),        # b3
            pl.BlockSpec((row_tile, HW), lambda i: (i, 0)),    # x row tile
        ],
        out_specs=pl.BlockSpec((row_tile, HW), lambda i: (i, 0)),
        compiler_params=pltpu.CompilerParams(
            dimension_semantics=("parallel",)),
    )(ye, w1, b1, w2, b2, w3, b3, xf)

    return out[:BC].reshape(B, C, H, W)


def _init_linear(kw, kb, fan_in, fan_out):
    # PyTorch nn.Linear default init: U(-1/sqrt(fan_in), 1/sqrt(fan_in)).
    bound = 1.0 / math.sqrt(float(fan_in))
    w = jax.random.uniform(kw, (fan_in, fan_out), jnp.float32, -bound, bound)
    b = jax.random.uniform(kb, (1, fan_out), jnp.float32, -bound, bound)
    return w, b


if __name__ == "__main__":
    B, C, H, W = 2, 4, 16, 16
    key = jax.random.PRNGKey(0)
    ks = jax.random.split(key, 8)

    x = jax.random.normal(ks[0], (B, C, H, W), jnp.float32)
    y = jax.random.normal(ks[1], (B,), jnp.float32)

    w1, b1 = _init_linear(ks[2], ks[3], 1, HID)
    w2, b2 = _init_linear(ks[4], ks[5], HID, HID)
    w3, b3 = _init_linear(ks[6], ks[7], HID, 2 * C)
    params = (w1, b1, w2, b2, w3, b3)

    out = continuous_conditional_actnorm(x, y, params)
    out = jax.block_until_ready(out)

    # Pure-JAX reference (matches the PyTorch forward semantics).
    yv = y[:, None]
    h1 = jax.nn.elu(yv @ w1 + b1)
    h2 = jax.nn.elu(h1 @ w2 + b2)
    sb_ref = h2 @ w3 + b3
    scale_ref = sb_ref[:, :C][:, :, None, None]
    bias_ref = sb_ref[:, C:][:, :, None, None]
    ref = x * scale_ref + bias_ref

    assert out.shape == (B, C, H, W)
    assert jnp.allclose(out, ref, atol=1e-4, rtol=1e-4), "mismatch vs reference"
    print("KERNEL_OK")
</pallas_src>

<mosaic_0001>
module attributes {stable_mosaic.version = 11 : i64} {
  func.func @kernel(%arg0: i32, %arg1: memref<8x1xf32, #tpu.memory_space<vmem>>, %arg2: memref<1x256xf32, #tpu.memory_space<vmem>>, %arg3: memref<1x256xf32, #tpu.memory_space<vmem>>, %arg4: memref<256x256xf32, #tpu.memory_space<vmem>>, %arg5: memref<1x256xf32, #tpu.memory_space<vmem>>, %arg6: memref<256x8xf32, #tpu.memory_space<vmem>>, %arg7: memref<1x8xf32, #tpu.memory_space<vmem>>, %arg8: memref<8x256xf32, #tpu.memory_space<vmem>>, %arg9: memref<8x256xf32, #tpu.memory_space<vmem>>) attributes {dimension_semantics = [#tpu.dimension_semantics<parallel>], iteration_bounds = array<i64: 1>, scalar_prefetch = 0 : i64, scratch_operands = 0 : i64, tpu.core_type = #tpu.core_type<tc>, window_params = [{pipeline_mode = #tpu.pipeline_mode<synchronous>, transform_indices = @transform_0, window_bounds = array<i64: 8, 1>}, {pipeline_mode = #tpu.pipeline_mode<synchronous>, transform_indices = @transform_1, window_bounds = array<i64: 1, 256>}, {pipeline_mode = #tpu.pipeline_mode<synchronous>, transform_indices = @transform_2, window_bounds = array<i64: 1, 256>}, {pipeline_mode = #tpu.pipeline_mode<synchronous>, transform_indices = @transform_3, window_bounds = array<i64: 256, 256>}, {pipeline_mode = #tpu.pipeline_mode<synchronous>, transform_indices = @transform_4, window_bounds = array<i64: 1, 256>}, {pipeline_mode = #tpu.pipeline_mode<synchronous>, transform_indices = @transform_5, window_bounds = array<i64: 256, 8>}, {pipeline_mode = #tpu.pipeline_mode<synchronous>, transform_indices = @transform_6, window_bounds = array<i64: 1, 8>}, {transform_indices = @transform_7, window_bounds = array<i64: 8, 256>}, {transform_indices = @transform_8, window_bounds = array<i64: 8, 256>}]} {
    %c8_i32 = arith.constant 8 : i32
    %0 = arith.muli %arg0, %c8_i32 : i32
    %1 = tpu.assume_multiple %0, 8 : i32
    %2 = arith.index_cast %1 : i32 to index
    %c0 = arith.constant 0 : index
    %3 = vector.load %arg1[%2, %c0] : memref<8x1xf32, #tpu.memory_space<vmem>>, vector<8x1xf32>
    %c0_0 = arith.constant 0 : index
    %c0_1 = arith.constant 0 : index
    %4 = vector.load %arg2[%c0_0, %c0_1] : memref<1x256xf32, #tpu.memory_space<vmem>>, vector<1x256xf32>
    %5 = vector.broadcast %3 : vector<8x1xf32> to vector<8x256xf32>
    %6 = vector.broadcast %4 : vector<1x256xf32> to vector<8x256xf32>
    %7 = arith.mulf %5, %6 : vector<8x256xf32>
    %c0_2 = arith.constant 0 : index
    %c0_3 = arith.constant 0 : index
    %8 = vector.load %arg3[%c0_2, %c0_3] : memref<1x256xf32, #tpu.memory_space<vmem>>, vector<1x256xf32>
    %9 = vector.broadcast %8 : vector<1x256xf32> to vector<8x256xf32>
    %10 = arith.addf %7, %9 : vector<8x256xf32>
    %cst = arith.constant 0.000000e+00 : f32
    %11 = vector.broadcast %cst : f32 to vector<8x256xf32>
    %12 = arith.cmpf ogt, %10, %11 : vector<8x256xf32>
    %cst_4 = arith.constant 0.000000e+00 : f32
    %13 = vector.broadcast %cst_4 : f32 to vector<8x256xf32>
    %14 = arith.minimumf %10, %13 : vector<8x256xf32>
    %15 = math.exp %14 : vector<8x256xf32>
    %cst_5 = arith.constant 1.000000e+00 : f32
    %16 = vector.broadcast %cst_5 : f32 to vector<8x256xf32>
    %17 = arith.subf %15, %16 : vector<8x256xf32>
    %18 = arith.select %12, %10, %17 : vector<8x256xi1>, vector<8x256xf32>
    %c0_6 = arith.constant 0 : index
    %c0_7 = arith.constant 0 : index
    %19 = vector.load %arg4[%c0_6, %c0_7] : memref<256x256xf32, #tpu.memory_space<vmem>>, vector<256x256xf32>
    %cst_8 = arith.constant dense<0.000000e+00> : vector<8x256xf32>
    %20 = tpu.matmul %18, %19, %cst_8 {dimension_numbers = #tpu.dot_dimension_numbers<[1], [0], [0], [1], [0, 0, 1, 1], [], []>} : vector<8x256xf32>, vector<256x256xf32>, vector<8x256xf32> -> vector<8x256xf32>
    %c0_9 = arith.constant 0 : index
    %c0_10 = arith.constant 0 : index
    %21 = vector.load %arg5[%c0_9, %c0_10] : memref<1x256xf32, #tpu.memory_space<vmem>>, vector<1x256xf32>
    %22 = vector.broadcast %21 : vector<1x256xf32> to vector<8x256xf32>
    %23 = arith.addf %20, %22 : vector<8x256xf32>
    %cst_11 = arith.constant 0.000000e+00 : f32
    %24 = vector.broadcast %cst_11 : f32 to vector<8x256xf32>
    %25 = arith.cmpf ogt, %23, %24 : vector<8x256xf32>
    %cst_12 = arith.constant 0.000000e+00 : f32
    %26 = vector.broadcast %cst_12 : f32 to vector<8x256xf32>
    %27 = arith.minimumf %23, %26 : vector<8x256xf32>
    %28 = math.exp %27 : vector<8x256xf32>
    %cst_13 = arith.constant 1.000000e+00 : f32
    %29 = vector.broadcast %cst_13 : f32 to vector<8x256xf32>
    %30 = arith.subf %28, %29 : vector<8x256xf32>
    %31 = arith.select %25, %23, %30 : vector<8x256xi1>, vector<8x256xf32>
    %c0_14 = arith.constant 0 : index
    %c0_15 = arith.constant 0 : index
    %32 = vector.load %arg6[%c0_14, %c0_15] : memref<256x8xf32, #tpu.memory_space<vmem>>, vector<256x8xf32>
    %cst_16 = arith.constant dense<0.000000e+00> : vector<8x8xf32>
    %33 = tpu.matmul %31, %32, %cst_16 {dimension_numbers = #tpu.dot_dimension_numbers<[1], [0], [0], [1], [0, 0, 1, 1], [], []>} : vector<8x256xf32>, vector<256x8xf32>, vector<8x8xf32> -> vector<8x8xf32>
    %c0_17 = arith.constant 0 : index
    %c0_18 = arith.constant 0 : index
    %34 = vector.load %arg7[%c0_17, %c0_18] : memref<1x8xf32, #tpu.memory_space<vmem>>, vector<1x8xf32>
    %35 = vector.broadcast %34 : vector<1x8xf32> to vector<8x8xf32>
    %36 = arith.addf %33, %35 : vector<8x8xf32>
    %37 = tpu.iota {dimensions = array<i32: 0>} : vector<8x1xi32>
    %38 = vector.broadcast %1 : i32 to vector<8x1xi32>
    %39 = arith.addi %38, %37 : vector<8x1xi32>
    %c4_i32 = arith.constant 4 : i32
    %40 = vector.broadcast %c4_i32 : i32 to vector<8x1xi32>
    %41 = arith.remsi %39, %40 : vector<8x1xi32>
    %42 = tpu.iota {dimensions = array<i32: 1>} : vector<8x8xi32>
    %43 = vector.broadcast %41 : vector<8x1xi32> to vector<8x8xi32>
    %44 = arith.cmpi eq, %42, %43 : vector<8x8xi32>
    %cst_19 = arith.constant 0.000000e+00 : f32
    %45 = vector.broadcast %cst_19 : f32 to vector<8x8xf32>
    %46 = arith.select %44, %36, %45 : vector<8x8xi1>, vector<8x8xf32>
    %cst_20 = arith.constant dense<0.000000e+00> : vector<8xf32>
    %47 = vector.multi_reduction <add>, %46, %cst_20 [1] : vector<8x8xf32> to vector<8xf32>
    %48 = vector.shape_cast %47 : vector<8xf32> to vector<8x1xf32>
    %c4_i32_21 = arith.constant 4 : i32
    %49 = vector.broadcast %c4_i32_21 : i32 to vector<8x1xi32>
    %50 = arith.addi %41, %49 : vector<8x1xi32>
    %51 = vector.broadcast %50 : vector<8x1xi32> to vector<8x8xi32>
    %52 = arith.cmpi eq, %42, %51 : vector<8x8xi32>
    %cst_22 = arith.constant 0.000000e+00 : f32
    %53 = vector.broadcast %cst_22 : f32 to vector<8x8xf32>
    %54 = arith.select %52, %36, %53 : vector<8x8xi1>, vector<8x8xf32>
    %cst_23 = arith.constant dense<0.000000e+00> : vector<8xf32>
    %55 = vector.multi_reduction <add>, %54, %cst_23 [1] : vector<8x8xf32> to vector<8xf32>
    %56 = vector.shape_cast %55 : vector<8xf32> to vector<8x1xf32>
    %c0_24 = arith.constant 0 : index
    %c0_25 = arith.constant 0 : index
    %57 = vector.load %arg8[%c0_24, %c0_25] : memref<8x256xf32, #tpu.memory_space<vmem>>, vector<8x256xf32>
    %58 = vector.broadcast %48 : vector<8x1xf32> to vector<8x256xf32>
    %59 = arith.mulf %57, %58 : vector<8x256xf32>
    %60 = vector.broadcast %56 : vector<8x1xf32> to vector<8x256xf32>
    %61 = arith.addf %59, %60 : vector<8x256xf32>
    %c0_26 = arith.constant 0 : index
    %c0_27 = arith.constant 0 : index
    %62 = vector.load %arg9[%c0_26, %c0_27] : memref<8x256xf32, #tpu.memory_space<vmem>>, vector<8x256xf32>
    tpu.vector_store %arg9[%c0_26, %c0_27], %61 {strides = array<i32>} : memref<8x256xf32, #tpu.memory_space<vmem>>, vector<8x256xf32>,
    return
  }
  func.func @transform_0(%arg0: i32) -> (i32, i32) {
    %c0_i32 = arith.constant 0 : i32
    %c0_i32_0 = arith.constant 0 : i32
    %c0_i32_1 = arith.constant 0 : i32
    return %c0_i32, %c0_i32_0 : i32, i32
  }
  func.func @transform_1(%arg0: i32) -> (i32, i32) {
    %c0_i32 = arith.constant 0 : i32
    %c0_i32_0 = arith.constant 0 : i32
    %c0_i32_1 = arith.constant 0 : i32
    return %c0_i32, %c0_i32_0 : i32, i32
  }
  func.func @transform_2(%arg0: i32) -> (i32, i32) {
    %c0_i32 = arith.constant 0 : i32
    %c0_i32_0 = arith.constant 0 : i32
    %c0_i32_1 = arith.constant 0 : i32
    return %c0_i32, %c0_i32_0 : i32, i32
  }
  func.func @transform_3(%arg0: i32) -> (i32, i32) {
    %c0_i32 = arith.constant 0 : i32
    %c0_i32_0 = arith.constant 0 : i32
    %c0_i32_1 = arith.constant 0 : i32
    return %c0_i32, %c0_i32_0 : i32, i32
  }
  func.func @transform_4(%arg0: i32) -> (i32, i32) {
    %c0_i32 = arith.constant 0 : i32
    %c0_i32_0 = arith.constant 0 : i32
    %c0_i32_1 = arith.constant 0 : i32
    return %c0_i32, %c0_i32_0 : i32, i32
  }
  func.func @transform_5(%arg0: i32) -> (i32, i32) {
    %c0_i32 = arith.constant 0 : i32
    %c0_i32_0 = arith.constant 0 : i32
    %c0_i32_1 = arith.constant 0 : i32
    return %c0_i32, %c0_i32_0 : i32, i32
  }
  func.func @transform_6(%arg0: i32) -> (i32, i32) {
    %c0_i32 = arith.constant 0 : i32
    %c0_i32_0 = arith.constant 0 : i32
    %c0_i32_1 = arith.constant 0 : i32
    return %c0_i32, %c0_i32_0 : i32, i32
  }
  func.func @transform_7(%arg0: i32) -> (i32, i32) {
    %c0_i32 = arith.constant 0 : i32
    %c0_i32_0 = arith.constant 0 : i32
    return %arg0, %c0_i32 : i32, i32
  }
  func.func @transform_8(%arg0: i32) -> (i32, i32) {
    %c0_i32 = arith.constant 0 : i32
    %c0_i32_0 = arith.constant 0 : i32
    return %arg0, %c0_i32 : i32, i32
  }
}

</mosaic_0001>

<llo_original>
// kernel: tpu_custom_call.1
$region0: #{tpu_custom_call.1}
  #allocation0 [shape = 'u32[]', space=smem, size = 0x4, offset = 0x4, fixed_abs, tag = 'smem constant byte address 0x4 - core index']
  #allocation1 [shape = 'u32[144,128]{1,0:T(1,128)}', space=vmem, size = 0x12000, scoped, tag = 'internal scratch']
  %s0 = inlined_call_operand.vmem [shape: f32[8,1], index: 0, kind: input, shape index: {}]
  %s1 = inlined_call_operand.vmem [shape: f32[1,256], index: 1, kind: input, shape index: {}]
  %s2 = inlined_call_operand.vmem [shape: f32[1,256], index: 2, kind: input, shape index: {}]
  %s3 = inlined_call_operand.hbm [shape: f32[256,256], index: 3, kind: input, shape index: {}]
  %s4 = inlined_call_operand.vmem [shape: f32[1,256], index: 4, kind: input, shape index: {}]
  %s5 = inlined_call_operand.vmem [shape: f32[256,8], index: 5, kind: input, shape index: {}]
  %s6 = inlined_call_operand.vmem [shape: f32[1,8], index: 6, kind: input, shape index: {}]
  %s7 = inlined_call_operand.vmem [shape: f32[8,256], index: 7, kind: input, shape index: {}]
  %s8 = inlined_call_operand.hbm [shape: f32[8,256], index: 8, kind: output, shape index: {}]
  %s9 = sld [smem:[#allocation0]]
  $region46: #{tpu_custom_call.1} parent=0
    _
  %s11 = ssub.s32 1, %s9
  %s12 = scalar_select 0, %s11, %s9
  $region1: #{tpu_custom_call.1} parent=0
    #allocation2 [shape = 'u8[262144]{0}', space=vmem, size = 0x40000, scoped, tag = 'input window, operand 3, single buffered']
    #allocation3 [shape = 's32[1]{0}', space=sflag, size = 0x4, scoped, tag = 'scoped memory for tpu_custom_call.1']
    #allocation4 [shape = 's32[1]{0}', space=sflag, size = 0x4, scoped, tag = 'scoped memory for tpu_custom_call.1']
    #allocation5 [shape = 'u8[8192]{0}', space=vmem, size = 0x2000, scoped, tag = 'output window, operand 0, single buffered']
    %13 = vsyncpa [#allocation3], 0
    %14 = vsyncpa [#allocation4], 0
    // Predicated region
    $region2: #{tpu_custom_call.1} parent=1 // pred_check
      _
    $region3: #{tpu_custom_call.1} parent=1 // pred_check_branch
      %16 = sbr.rel (0) target = $region5
    $region4: #{tpu_custom_call.1} parent=1 // pred_region
      _
    $region5: #{tpu_custom_call.1} parent=1 // pred_fallthru
      _
    // Predicated region
    $region6: #{tpu_custom_call.1} parent=1 // pred_check
      _
    $region7: #{tpu_custom_call.1} parent=1 // pred_check_branch
      %18 = sbr.rel (0) target = $region9
    $region8: #{tpu_custom_call.1} parent=1 // pred_region
      _
    $region9: #{tpu_custom_call.1} parent=1 // pred_fallthru
      _
    // Predicated region
    $region10: #{tpu_custom_call.1} parent=1 // pred_check
      _
    $region11: #{tpu_custom_call.1} parent=1 // pred_check_branch
      %20 = sbr.rel (0) target = $region13
    $region12: #{tpu_custom_call.1} parent=1 // pred_region
      _
    $region13: #{tpu_custom_call.1} parent=1 // pred_fallthru
      _
    // Predicated region
    $region14: #{tpu_custom_call.1} parent=1 // pred_check
      _
    $region15: #{tpu_custom_call.1} parent=1 // pred_check_branch
      %22 = sbr.rel (0) target = $region17
    $region16: #{tpu_custom_call.1} parent=1 // pred_region
      %s24 = ssub.s32 8192, 8192
      %25 = vsyncadd [#allocation3], %s24
      %s26 = sshll.u32 [#allocation2], 4
      %s27 = int_to_ptr.vmem [resolvable:$true] %s26
      %32 = dma.hbm_to_vmem [thread:$0]  %s3, 8192, %s27, [#allocation3], 256, 256, 16
    $region17: #{tpu_custom_call.1} parent=1 // pred_fallthru
      _
    // Predicated region
    $region18: #{tpu_custom_call.1} parent=1 // pred_check
      _
    $region19: #{tpu_custom_call.1} parent=1 // pred_check_branch
      %34 = sbr.rel (0) target = $region21
    $region20: #{tpu_custom_call.1} parent=1 // pred_region
      _
    $region21: #{tpu_custom_call.1} parent=1 // pred_fallthru
      _
    // Predicated region
    $region22: #{tpu_custom_call.1} parent=1 // pred_check
      _
    $region23: #{tpu_custom_call.1} parent=1 // pred_check_branch
      %36 = sbr.rel (0) target = $region25
    $region24: #{tpu_custom_call.1} parent=1 // pred_region
      _
    $region25: #{tpu_custom_call.1} parent=1 // pred_fallthru
      _
    // Predicated region
    $region26: #{tpu_custom_call.1} parent=1 // pred_check
      _
    $region27: #{tpu_custom_call.1} parent=1 // pred_check_branch
      %38 = sbr.rel (0) target = $region29
    $region28: #{tpu_custom_call.1} parent=1 // pred_region
      _
    $region29: #{tpu_custom_call.1} parent=1 // pred_fallthru
      _
    // Predicated region
    $region30: #{tpu_custom_call.1} parent=1 // pred_check
      _
    $region31: #{tpu_custom_call.1} parent=1 // pred_check_branch
      %40 = sbr.rel (0) target = $region33
    $region32: #{tpu_custom_call.1} parent=1 // pred_region
      _
    $region33: #{tpu_custom_call.1} parent=1 // pred_fallthru
      _
    // Predicated region
    $region34: #{tpu_custom_call.1} parent=1 // pred_check
      _
    $region35: #{tpu_custom_call.1} parent=1 // pred_check_branch
      %42 = sbr.rel (0) target = $region37
    $region36: #{tpu_custom_call.1} parent=1 // pred_region
      %43 = dma.done [#allocation3], 8192
    $region37: #{tpu_custom_call.1} parent=1 // pred_fallthru
      _
    %s44 = smul.u32 0, 8
    %s45 = scalar_lea.vmem %s0, %s44
    %v46 = vld [vmem:[%s45] sm:$0xff]
    %v47 = vld [vmem:[%s1] sm:$0x3]
    %49 = vset.pattern.permute.xlu0 0
    %50 = vperm.xlu0 %49, %v46
    %v51 = vpop.permute.xlu0 %50
    %v54 = vlaneseq
    %v55 = vshrl.u32 %v54, 7
    %v56 = vsub.s32 0, %v55
    %v57 = vrot.slane %v47, %v56
    %v58 = vlaneseq
    %v59 = vshrl.u32 %v58, 7
    %v60 = vsub.s32 1, %v59
    %v61 = vrot.slane %v47, %v60
    %v64 = vmul.f32 %v51, %v57
    %v65 = vmul.f32 %v51, %v61
    %v66 = vld [vmem:[%s2] sm:$0x3]
    %v68 = vlaneseq
    %v69 = vshrl.u32 %v68, 7
    %v70 = vsub.s32 0, %v69
    %v71 = vrot.slane %v66, %v70
    %v72 = vlaneseq
    %v73 = vshrl.u32 %v72, 7
    %v74 = vsub.s32 1, %v73
    %v75 = vrot.slane %v66, %v74
    %v78 = vadd.f32 %v64, %v71
    %v79 = vadd.f32 %v65, %v75
    %vm80 = vcmp.gt.f32.partialorder %v78, 0.0
    %vm81 = vcmp.gt.f32.partialorder %v79, 0.0
    %v82 = vmin.f32 %v78, 0.0
    %v83 = vmin.f32 %v79, 0.0
    %v84 = vmul.f32 %v82, 1.442695
    %v85 = vpow.pop %v84
    %v86 = vmul.f32 %v83, 1.442695
    %v87 = vpow.pop %v86
    %v88 = vsub.f32 %v85, 1.0
    %v89 = vsub.f32 %v87, 1.0
    %v90 = vsel %vm80, %v78, %v88
    %v91 = vsel %vm81, %v79, %v89
    %v92 = vld [vmem:[#allocation2] sm:$0xff]
    %v93 = vld [vmem:[#allocation2 + $0x8] sm:$0xff]
    %v94 = vld [vmem:[#allocation2 + $0x10] sm:$0xff]
    %v95 = vld [vmem:[#allocation2 + $0x18] sm:$0xff]
    %v96 = vld [vmem:[#allocation2 + $0x20] sm:$0xff]
    %v97 = vld [vmem:[#allocation2 + $0x28] sm:$0xff]
    %v98 = vld [vmem:[#allocation2 + $0x30] sm:$0xff]
    %v99 = vld [vmem:[#allocation2 + $0x38] sm:$0xff]
    %v100 = vld [vmem:[#allocation2 + $0x40] sm:$0xff]
    %v101 = vld [vmem:[#allocation2 + $0x48] sm:$0xff]
    %v102 = vld [vmem:[#allocation2 + $0x50] sm:$0xff]
    %v103 = vld [vmem:[#allocation2 + $0x58] sm:$0xff]
    %v104 = vld [vmem:[#allocation2 + $0x60] sm:$0xff]
    %v105 = vld [vmem:[#allocation2 + $0x68] sm:$0xff]
    %v106 = vld [vmem:[#allocation2 + $0x70] sm:$0xff]
    %v107 = vld [vmem:[#allocation2 + $0x78] sm:$0xff]
    %v108 = vld [vmem:[#allocation2 + $0x80] sm:$0xff]
    %v109 = vld [vmem:[#allocation2 + $0x88] sm:$0xff]
    %v110 = vld [vmem:[#allocation2 + $0x90] sm:$0xff]
    %v111 = vld [vmem:[#allocation2 + $0x98] sm:$0xff]
    %v112 = vld [vmem:[#allocation2 + $0xa0] sm:$0xff]
    %v113 = vld [vmem:[#allocation2 + $0xa8] sm:$0xff]
    %v114 = vld [vmem:[#allocation2 + $0xb0] sm:$0xff]
    %v115 = vld [vmem:[#allocation2 + $0xb8] sm:$0xff]
    %v116 = vld [vmem:[#allocation2 + $0xc0] sm:$0xff]
    %v117 = vld [vmem:[#allocation2 + $0xc8] sm:$0xff]
    %v118 = vld [vmem:[#allocation2 + $0xd0] sm:$0xff]
    %v119 = vld [vmem:[#allocation2 + $0xd8] sm:$0xff]
    %v120 = vld [vmem:[#allocation2 + $0xe0] sm:$0xff]
    %v121 = vld [vmem:[#allocation2 + $0xe8] sm:$0xff]
    %v122 = vld [vmem:[#allocation2 + $0xf0] sm:$0xff]
    %v123 = vld [vmem:[#allocation2 + $0xf8] sm:$0xff]
    %v124 = vld [vmem:[#allocation2 + $0x100] sm:$0xff]
    %v125 = vld [vmem:[#allocation2 + $0x108] sm:$0xff]
    %v126 = vld [vmem:[#allocation2 + $0x110] sm:$0xff]
    %v127 = vld [vmem:[#allocation2 + $0x118] sm:$0xff]
    %v128 = vld [vmem:[#allocation2 + $0x120] sm:$0xff]
    %v129 = vld [vmem:[#allocation2 + $0x128] sm:$0xff]
    %v130 = vld [vmem:[#allocation2 + $0x130] sm:$0xff]
    %v131 = vld [vmem:[#allocation2 + $0x138] sm:$0xff]
    %v132 = vld [vmem:[#allocation2 + $0x140] sm:$0xff]
    %v133 = vld [vmem:[#allocation2 + $0x148] sm:$0xff]
    %v134 = vld [vmem:[#allocation2 + $0x150] sm:$0xff]
    %v135 = vld [vmem:[#allocation2 + $0x158] sm:$0xff]
    %v136 = vld [vmem:[#allocation2 + $0x160] sm:$0xff]
    %v137 = vld [vmem:[#allocation2 + $0x168] sm:$0xff]
    %v138 = vld [vmem:[#allocation2 + $0x170] sm:$0xff]
    %v139 = vld [vmem:[#allocation2 + $0x178] sm:$0xff]
    %v140 = vld [vmem:[#allocation2 + $0x180] sm:$0xff]
    %v141 = vld [vmem:[#allocation2 + $0x188] sm:$0xff]
    %v142 = vld [vmem:[#allocation2 + $0x190] sm:$0xff]
    %v143 = vld [vmem:[#allocation2 + $0x198] sm:$0xff]
    %v144 = vld [vmem:[#allocation2 + $0x1a0] sm:$0xff]
    %v145 = vld [vmem:[#allocation2 + $0x1a8] sm:$0xff]
    %v146 = vld [vmem:[#allocation2 + $0x1b0] sm:$0xff]
    %v147 = vld [vmem:[#allocation2 + $0x1b8] sm:$0xff]
    %v148 = vld [vmem:[#allocation2 + $0x1c0] sm:$0xff]
    %v149 = vld [vmem:[#allocation2 + $0x1c8] sm:$0xff]
    %v150 = vld [vmem:[#allocation2 + $0x1d0] sm:$0xff]
    %v151 = vld [vmem:[#allocation2 + $0x1d8] sm:$0xff]
    %v152 = vld [vmem:[#allocation2 + $0x1e0] sm:$0xff]
    %v153 = vld [vmem:[#allocation2 + $0x1e8] sm:$0xff]
    %v154 = vld [vmem:[#allocation2 + $0x1f0] sm:$0xff]
    %v155 = vld [vmem:[#allocation2 + $0x1f8] sm:$0xff]
    %v156 = vld [vmem:[%s4] sm:$0x3]
    %v158 = vlaneseq
    %v159 = vshrl.u32 %v158, 7
    %v160 = vsub.s32 0, %v159
    %v161 = vrot.slane %v156, %v160
    %v162 = vlaneseq
    %v163 = vshrl.u32 %v162, 7
    %v164 = vsub.s32 1, %v163
    %v165 = vrot.slane %v156, %v164
    %168 = vmatprep.subr.mxu0 %v123
    %169 = vmatpush1.msra.mxu0 %v122
    %170 = vmatprep.subr.mxu0 %v121
    %171 = vmatpush1.msra.mxu0 %v120
    %172 = vmatprep.subr.mxu0 %v119
    %173 = vmatpush1.msra.mxu0 %v118
    %174 = vmatprep.subr.mxu0 %v117
    %175 = vmatpush1.msra.mxu0 %v116
    %176 = vmatprep.subr.mxu0 %v115
    %177 = vmatpush1.msra.mxu0 %v114
    %178 = vmatprep.subr.mxu0 %v113
    %179 = vmatpush1.msra.mxu0 %v112
    %180 = vmatprep.subr.mxu0 %v111
    %181 = vmatpush1.msra.mxu0 %v110
    %182 = vmatprep.subr.mxu0 %v109
    %183 = vmatpush1.msra.mxu0 %v108
    %184 = vmatprep.subr.mxu0 %v107
    %185 = vmatpush1.msra.mxu0 %v106
    %186 = vmatprep.subr.mxu0 %v105
    %187 = vmatpush1.msra.mxu0 %v104
    %188 = vmatprep.subr.mxu0 %v103
    %189 = vmatpush1.msra.mxu0 %v102
    %190 = vmatprep.subr.mxu0 %v101
    %191 = vmatpush1.msra.mxu0 %v100
    %192 = vmatprep.subr.mxu0 %v99
    %193 = vmatpush1.msra.mxu0 %v98
    %194 = vmatprep.subr.mxu0 %v97
    %195 = vmatpush1.msra.mxu0 %v96
    %196 = vmatprep.subr.mxu0 %v95
    %197 = vmatpush1.msra.mxu0 %v94
    %198 = vmatprep.subr.mxu0 %v93
    %199 = vmatpush1.msra.mxu0 %v92
    %200 = vmatprep.subr.mxu0 %v155
    %201 = vmatpush2.msra.mxu0 %v154
    %202 = vmatprep.subr.mxu0 %v153
    %203 = vmatpush2.msra.mxu0 %v152
    %204 = vmatprep.subr.mxu0 %v151
    %205 = vmatpush2.msra.mxu0 %v150
    %206 = vmatprep.subr.mxu0 %v149
    %207 = vmatpush2.msra.mxu0 %v148
    %208 = vmatprep.subr.mxu0 %v147
    %209 = vmatpush2.msra.mxu0 %v146
    %210 = vmatprep.subr.mxu0 %v145
    %211 = vmatpush2.msra.mxu0 %v144
    %212 = vmatprep.subr.mxu0 %v143
    %213 = vmatpush2.msra.mxu0 %v142
    %214 = vmatprep.subr.mxu0 %v141
    %215 = vmatpush2.msra.mxu0 %v140
    %216 = vmatprep.subr.mxu0 %v139
    %217 = vmatpush2.msra.mxu0 %v138
    %218 = vmatprep.subr.mxu0 %v137
    %219 = vmatpush2.msra.mxu0 %v136
    %220 = vmatprep.subr.mxu0 %v135
    %221 = vmatpush2.msra.mxu0 %v134
    %222 = vmatprep.subr.mxu0 %v133
    %223 = vmatpush2.msra.mxu0 %v132
    %224 = vmatprep.subr.mxu0 %v131
    %225 = vmatpush2.msra.mxu0 %v130
    %226 = vmatprep.subr.mxu0 %v129
    %227 = vmatpush2.msra.mxu0 %v128
    %228 = vmatprep.subr.mxu0 %v127
    %229 = vmatpush2.msra.mxu0 %v126
    %230 = vmatprep.subr.mxu0 %v125
    %231 = vmatpush2.msra.mxu0 %v124
    %232 = vmatprep.mubr.f32.mxu0 %v91
    %233 = vmatmul.mubr.f32.gmra.mxu0 %v90
    %v234 = vpop.f32.mrf.mxu0
    %v235 = vadd.f32 %v161, %v234
    %v236 = vpop.f32.mrf.mxu0
    %v237 = vadd.f32 %v165, %v236
    %238 = vdwg.mxu0
    %vm239 = vcmp.gt.f32.partialorder %v235, 0.0
    %vm240 = vcmp.gt.f32.partialorder %v237, 0.0
    %v241 = vmin.f32 %v235, 0.0
    %v242 = vmin.f32 %v237, 0.0
    %v243 = vmul.f32 %v241, 1.442695
    %v244 = vpow.pop %v243
    %v245 = vmul.f32 %v242, 1.442695
    %v246 = vpow.pop %v245
    %v247 = vsub.f32 %v244, 1.0
    %v248 = vsub.f32 %v246, 1.0
    %v249 = vsel %vm239, %v235, %v247
    %v250 = vsel %vm240, %v237, %v248
    %v251 = vld [vmem:[%s5] sm:$0xff]
    %v252 = vld [vmem:[%s5 + $0x8] sm:$0xff]
    %v253 = vld [vmem:[%s5 + $0x10] sm:$0xff]
    %v254 = vld [vmem:[%s5 + $0x18] sm:$0xff]
    %v255 = vld [vmem:[%s5 + $0x20] sm:$0xff]
    %v256 = vld [vmem:[%s5 + $0x28] sm:$0xff]
    %v257 = vld [vmem:[%s5 + $0x30] sm:$0xff]
    %v258 = vld [vmem:[%s5 + $0x38] sm:$0xff]
    %v259 = vld [vmem:[%s5 + $0x40] sm:$0xff]
    %v260 = vld [vmem:[%s5 + $0x48] sm:$0xff]
    %v261 = vld [vmem:[%s5 + $0x50] sm:$0xff]
    %v262 = vld [vmem:[%s5 + $0x58] sm:$0xff]
    %v263 = vld [vmem:[%s5 + $0x60] sm:$0xff]
    %v264 = vld [vmem:[%s5 + $0x68] sm:$0xff]
    %v265 = vld [vmem:[%s5 + $0x70] sm:$0xff]
    %v266 = vld [vmem:[%s5 + $0x78] sm:$0xff]
    %v267 = vld [vmem:[%s5 + $0x80] sm:$0xff]
    %v268 = vld [vmem:[%s5 + $0x88] sm:$0xff]
    %v269 = vld [vmem:[%s5 + $0x90] sm:$0xff]
    %v270 = vld [vmem:[%s5 + $0x98] sm:$0xff]
    %v271 = vld [vmem:[%s5 + $0xa0] sm:$0xff]
    %v272 = vld [vmem:[%s5 + $0xa8] sm:$0xff]
    %v273 = vld [vmem:[%s5 + $0xb0] sm:$0xff]
    %v274 = vld [vmem:[%s5 + $0xb8] sm:$0xff]
    %v275 = vld [vmem:[%s5 + $0xc0] sm:$0xff]
    %v276 = vld [vmem:[%s5 + $0xc8] sm:$0xff]
    %v277 = vld [vmem:[%s5 + $0xd0] sm:$0xff]
    %v278 = vld [vmem:[%s5 + $0xd8] sm:$0xff]
    %v279 = vld [vmem:[%s5 + $0xe0] sm:$0xff]
    %v280 = vld [vmem:[%s5 + $0xe8] sm:$0xff]
    %v281 = vld [vmem:[%s5 + $0xf0] sm:$0xff]
    %v282 = vld [vmem:[%s5 + $0xf8] sm:$0xff]
    %v283 = vld [vmem:[%s6] sm:$0x1]
    %v285 = vlaneseq
    %v286 = vshrl.u32 %v285, 7
    %v287 = vsub.s32 0, %v286
    %v288 = vrot.slane %v283, %v287
    %290 = vmatprep.subr.mxu0 0.0
    %291 = vmatpush1.msra.mxu0 %v266
    %292 = vmatprep.subr.mxu0 0.0
    %293 = vmatpush1.msra.mxu0 %v265
    %294 = vmatprep.subr.mxu0 0.0
    %295 = vmatpush1.msra.mxu0 %v264
    %296 = vmatprep.subr.mxu0 0.0
    %297 = vmatpush1.msra.mxu0 %v263
    %298 = vmatprep.subr.mxu0 0.0
    %299 = vmatpush1.msra.mxu0 %v262
    %300 = vmatprep.subr.mxu0 0.0
    %301 = vmatpush1.msra.mxu0 %v261
    %302 = vmatprep.subr.mxu0 0.0
    %303 = vmatpush1.msra.mxu0 %v260
    %304 = vmatprep.subr.mxu0 0.0
    %305 = vmatpush1.msra.mxu0 %v259
    %306 = vmatprep.subr.mxu0 0.0
    %307 = vmatpush1.msra.mxu0 %v258
    %308 = vmatprep.subr.mxu0 0.0
    %309 = vmatpush1.msra.mxu0 %v257
    %310 = vmatprep.subr.mxu0 0.0
    %311 = vmatpush1.msra.mxu0 %v256
    %312 = vmatprep.subr.mxu0 0.0
    %313 = vmatpush1.msra.mxu0 %v255
    %314 = vmatprep.subr.mxu0 0.0
    %315 = vmatpush1.msra.mxu0 %v254
    %316 = vmatprep.subr.mxu0 0.0
    %317 = vmatpush1.msra.mxu0 %v253
    %318 = vmatprep.subr.mxu0 0.0
    %319 = vmatpush1.msra.mxu0 %v252
    %320 = vmatprep.subr.mxu0 0.0
    %321 = vmatpush1.msra.mxu0 %v251
    %322 = vmatprep.subr.mxu0 0.0
    %323 = vmatpush2.msra.mxu0 %v282
    %324 = vmatprep.subr.mxu0 0.0
    %325 = vmatpush2.msra.mxu0 %v281
    %326 = vmatprep.subr.mxu0 0.0
    %327 = vmatpush2.msra.mxu0 %v280
    %328 = vmatprep.subr.mxu0 0.0
    %329 = vmatpush2.msra.mxu0 %v279
    %330 = vmatprep.subr.mxu0 0.0
    %331 = vmatpush2.msra.mxu0 %v278
    %332 = vmatprep.subr.mxu0 0.0
    %333 = vmatpush2.msra.mxu0 %v277
    %334 = vmatprep.subr.mxu0 0.0
    %335 = vmatpush2.msra.mxu0 %v276
    %336 = vmatprep.subr.mxu0 0.0
    %337 = vmatpush2.msra.mxu0 %v275
    %338 = vmatprep.subr.mxu0 0.0
    %339 = vmatpush2.msra.mxu0 %v274
    %340 = vmatprep.subr.mxu0 0.0
    %341 = vmatpush2.msra.mxu0 %v273
    %342 = vmatprep.subr.mxu0 0.0
    %343 = vmatpush2.msra.mxu0 %v272
    %344 = vmatprep.subr.mxu0 0.0
    %345 = vmatpush2.msra.mxu0 %v271
    %346 = vmatprep.subr.mxu0 0.0
    %347 = vmatpush2.msra.mxu0 %v270
    %348 = vmatprep.subr.mxu0 0.0
    %349 = vmatpush2.msra.mxu0 %v269
    %350 = vmatprep.subr.mxu0 0.0
    %351 = vmatpush2.msra.mxu0 %v268
    %352 = vmatprep.subr.mxu0 0.0
    %353 = vmatpush2.msra.mxu0 %v267
    %354 = vmatprep.mubr.f32.mxu0 %v250
    %355 = vmatmul.mubr.f32.gmra.mxu0 %v249
    %v356 = vpop.f32.mrf.mxu0
    %v357 = vadd.f32 %v288, %v356
    %v358 = vpop.f32.mrf.mxu0
    %359 = vdwg.mxu0
    %v360 = vlaneseq
    %v361 = vshrl.u32 %v360, 7
    %v362 = vstv %s44
    %v363 = vadd.s32 %v362, %v361
    %vm364 = vcmp.lt.s32.totalorder %v363, 0
    %v365 = vsub.s32 0, %v363
    %v366 = vsel %vm364, %v365, %v363
    %v367 = vshrl.u32 %v366, 2
    %v368 = vand.u32 %v366, 3
    %v369 = vsub.s32 0, %v368
    %v370 = vsel %vm364, %v369, %v368
    %v371 = vlaneseq
    %v372 = vand.u32 %v371, 127
    %vm373 = vcmp.eq.s32.totalorder %v372, %v370
    %v374 = vsel %vm373, %v357, 0.0
    %vm375 = vcmask 64512
    %v376 = vsel %vm375, %v374, 0.0
    %377 = vadd.xlane.f32.xlu0 %v376
    %v378 = vpop.xlane.xlu0 %377
    %v379 = vadd.s32 %v370, 4
    %vm380 = vcmp.eq.s32.totalorder %v372, %v379
    %v381 = vsel %vm380, %v357, 0.0
    %v382 = vsel %vm375, %v381, 0.0
    %383 = vadd.xlane.f32.xlu0 %v382
    %v384 = vpop.xlane.xlu0 %383
    %v385 = vld [vmem:[%s7] sm:$0xff]
    %v386 = vld [vmem:[%s7 + $0x8] sm:$0xff]
    %v387 = vmul.f32 %v385, %v378
    %v388 = vmul.f32 %v386, %v378
    %v389 = vadd.f32 %v387, %v384
    %v390 = vadd.f32 %v388, %v384
    %391 = vst [vmem:[#allocation5] sm:$0xff] %v389
    %392 = vst [vmem:[#allocation5 + $0x8] sm:$0xff] %v390
    // Predicated region
    $region38: #{tpu_custom_call.1} parent=1 // pred_check
      _
    $region39: #{tpu_custom_call.1} parent=1 // pred_check_branch
      %394 = sbr.rel (0) target = $region41
    $region40: #{tpu_custom_call.1} parent=1 // pred_region
      %s396 = ssub.s32 256, 256
      %397 = vsyncadd [#allocation4], %s396
      %s399 = sshll.u32 [#allocation5], 4
      %s400 = int_to_ptr.vmem [resolvable:$true] %s399
      %402 = dma.vmem_to_hbm [thread:$0]  %s400, 256, %s8, [#allocation4]
    $region41: #{tpu_custom_call.1} parent=1 // pred_fallthru
      _
    // Predicated region
    $region42: #{tpu_custom_call.1} parent=1 // pred_check
      _
    $region43: #{tpu_custom_call.1} parent=1 // pred_check_branch
      %404 = sbr.rel (0) target = $region45
    $region44: #{tpu_custom_call.1} parent=1 // pred_region
      %405 = dma.done [#allocation4], 256
    $region45: #{tpu_custom_call.1} parent=1 // pred_fallthru
      _
    %406 = vsyncpa [#allocation3], 1
    %407 = vsyncpa [#allocation4], 1

</llo_original>
